<compile_context>
chip_gen: v7x
topology: tpu7x:2x2x1
jax: 0.10.0
libtpu: 0.0.40
codegen_flags: <defaults>
</compile_context>

<pallas_src>
from typing import Optional, Tuple, Union

import jax
import jax.numpy as jnp
from jax.experimental import pallas as pl
from jax.experimental.pallas import tpu as pltpu

_MiB = 1024 * 1024
# Conservative total-VMEM budget used when sizing the per-step channel block.
_VMEM_BUDGET = 32 * _MiB


# ---------------------------------------------------------------------------
# Glue: size resolution (mirrors kornia._side_to_image_size)
# ---------------------------------------------------------------------------
def _side_to_image_size(side_size: int, aspect_ratio: float, side: str = "short") -> Tuple[int, int]:
    if side not in ("short", "long", "vert", "horz"):
        raise ValueError(f"side can be one of 'short', 'long', 'vert', and 'horz'. Got '{side}'")
    if side == "vert":
        return (side_size, int(side_size * aspect_ratio))
    if side == "horz":
        return (int(side_size / aspect_ratio), side_size)
    if (side == "short") ^ (aspect_ratio < 1.0):
        return (side_size, int(side_size * aspect_ratio))
    return (int(side_size / aspect_ratio), side_size)


# ---------------------------------------------------------------------------
# Glue: bilinear interpolation weight matrix (PyTorch rule)
# ---------------------------------------------------------------------------
def _bilinear_weight_matrix(out_size: int, in_size: int, align_corners: bool) -> jnp.ndarray:
    d = jnp.arange(out_size, dtype=jnp.float32)
    if align_corners and out_size > 1:
        scale = (in_size - 1) / (out_size - 1)
        src = scale * d
    else:
        scale = in_size / out_size
        # PyTorch clamps the source coordinate to >= 0 for align_corners=False
        src = jnp.maximum(scale * (d + 0.5) - 0.5, 0.0)
    i0 = jnp.floor(src).astype(jnp.int32)
    i0 = jnp.minimum(i0, in_size - 1)
    i1 = jnp.minimum(i0 + 1, in_size - 1)
    w1 = src - i0.astype(jnp.float32)
    w0 = 1.0 - w1
    m0 = jax.nn.one_hot(i0, in_size, dtype=jnp.float32) * w0[:, None]
    m1 = jax.nn.one_hot(i1, in_size, dtype=jnp.float32) * w1[:, None]
    return m0 + m1  # (out_size, in_size)


# ---------------------------------------------------------------------------
# VMEM sizing helpers
# ---------------------------------------------------------------------------
def _vmem_estimate(tc: int, H: int, W: int, Ho: int, Wo: int,
                   x_bytes: int, out_bytes: int, w_bytes: int) -> int:
    # double-buffered input/output blocks
    io = 2 * tc * (H * W * x_bytes + Ho * Wo * out_bytes)
    # double-buffered (constant-index) weight blocks
    weights = 2 * (Ho * H + W * Wo) * w_bytes
    # rough upper bound on in-kernel temporaries (f32 copies, intermediates,
    # broadcast weights)
    scratch = tc * (2 * H * W + 2 * max(H * Wo, Ho * W) + Ho * H + W * Wo) * 4
    return io + weights + scratch


def _choose_channels_per_step(N: int, H: int, W: int, Ho: int, Wo: int,
                              x_bytes: int, out_bytes: int, w_bytes: int) -> int:
    best = 1
    for tc in range(1, N + 1):
        if N % tc == 0 and _vmem_estimate(tc, H, W, Ho, Wo, x_bytes, out_bytes, w_bytes) <= _VMEM_BUDGET:
            best = tc
    return best


# ---------------------------------------------------------------------------
# Pallas kernel: per block of TC channel-slices, out = Wh @ x @ Ww^T
# ---------------------------------------------------------------------------
def _make_resize_kernel(tc: int, H: int, W: int, Ho: int, Wo: int, *,
                        w_first: bool, flat: bool, compute_dtype):
    """Build a kernel specialized (at trace time) for shapes / order / layout."""

    def kernel(x_ref, wh_ref, wwT_ref, o_ref):
        x = x_ref[...].astype(jnp.float32)      # (tc, H, W)
        wh = wh_ref[...]                        # (Ho, H), compute dtype
        wwT = wwT_ref[...]                      # (W, Wo), compute dtype

        if w_first:
            # --- W-resize first ---
            if flat:
                # One big MXU matmul: (tc*H, W) @ (W, Wo) -> (tc*H, Wo)
                y = jnp.dot(x.reshape(tc * H, W).astype(compute_dtype), wwT,
                            preferred_element_type=jnp.float32)
                y = y.reshape(tc, H, Wo)        # f32; H % 8 == 0 -> free re-tiling
            else:
                wwT_b = jnp.broadcast_to(wwT[None], (tc, W, Wo))
                y = jax.lax.dot_general(
                    x.astype(compute_dtype), wwT_b,
                    dimension_numbers=(((2,), (1,)), ((0,), (0,))),
                    preferred_element_type=jnp.float32)      # (tc, H, Wo)
            # H-resize (batched over channels)
            wh_b = jnp.broadcast_to(wh[None], (tc, Ho, H))
            out = jax.lax.dot_general(
                wh_b, y.astype(compute_dtype),
                dimension_numbers=(((2,), (1,)), ((0,), (0,))),
                preferred_element_type=jnp.float32)          # (tc, Ho, Wo)
        else:
            # --- H-resize first (batched over channels) ---
            wh_b = jnp.broadcast_to(wh[None], (tc, Ho, H))
            t = jax.lax.dot_general(
                wh_b, x.astype(compute_dtype),
                dimension_numbers=(((2,), (1,)), ((0,), (0,))),
                preferred_element_type=jnp.float32)          # (tc, Ho, W)
            if flat:
                # One big MXU matmul: (tc*Ho, W) @ (W, Wo) -> (tc*Ho, Wo)
                out = jnp.dot(t.reshape(tc * Ho, W).astype(compute_dtype), wwT,
                              preferred_element_type=jnp.float32)
                out = out.reshape(tc, Ho, Wo)
            else:
                wwT_b = jnp.broadcast_to(wwT[None], (tc, W, Wo))
                out = jax.lax.dot_general(
                    t.astype(compute_dtype), wwT_b,
                    dimension_numbers=(((2,), (1,)), ((0,), (0,))),
                    preferred_element_type=jnp.float32)      # (tc, Ho, Wo)

        if jnp.issubdtype(o_ref.dtype, jnp.integer):
            out = jnp.round(out)
        o_ref[...] = out.astype(o_ref.dtype)

    return kernel


# ---------------------------------------------------------------------------
# Wrapper: build weights, pick order / block sizes, call the Pallas kernel
# ---------------------------------------------------------------------------
def _resize_bilinear_pallas(x: jnp.ndarray, size: Tuple[int, int], align_corners: bool, *,
                            compute_dtype=jnp.bfloat16,
                            channels_per_step: Optional[int] = None) -> jnp.ndarray:
    *lead, H, W = x.shape
    H, W = int(H), int(W)
    Ho, Wo = int(size[0]), int(size[1])
    N = 1
    for d in lead:
        N *= int(d)
    N = max(N, 1)
    x_flat = x.reshape(N, H, W)

    out_dtype = x.dtype
    x_bytes = jnp.dtype(x.dtype).itemsize
    out_bytes = jnp.dtype(out_dtype).itemsize
    w_bytes = jnp.dtype(compute_dtype).itemsize

    # TODO(synk): HD/4K images need Ho/Wo output tiling + banded (scalar-prefetch)
    # weights; until then fall back to plain JAX for sizes that would blow VMEM.
    if _vmem_estimate(1, H, W, Ho, Wo, x_bytes, out_bytes, w_bytes) > _VMEM_BUDGET:
        wh32 = _bilinear_weight_matrix(Ho, H, align_corners)
        ww32 = _bilinear_weight_matrix(Wo, W, align_corners)
        out = jnp.einsum("oh,nhw,wp->nop", wh32, x_flat.astype(jnp.float32), ww32.T)
        if jnp.issubdtype(out_dtype, jnp.integer):
            out = jnp.round(out)
        return out.astype(out_dtype).reshape(*lead, Ho, Wo)

    # Interpolation weights, shipped to the kernel in the MXU compute dtype.
    wh = _bilinear_weight_matrix(Ho, H, align_corners).astype(compute_dtype)       # (Ho, H)
    wwT = _bilinear_weight_matrix(Wo, W, align_corners).T.astype(compute_dtype)    # (W, Wo)

    if channels_per_step is None:
        tc = _choose_channels_per_step(N, H, W, Ho, Wo, x_bytes, out_bytes, w_bytes)
    else:
        tc = int(channels_per_step)
        if N % tc != 0:
            tc = 1

    # Pick the cheaper contraction order (MXU FLOPs per channel) at trace time.
    cost_w_first = H * Wo * (W + Ho)   # x @ wwT first, then Wh
    cost_h_first = Ho * W * (H + Wo)   # Wh @ x first, then wwT
    w_first = cost_w_first <= cost_h_first
    # The big flat matmul requires the merged leading dim to stay sublane-aligned.
    flat = (H % 8 == 0) if w_first else (Ho % 8 == 0)

    kernel = _make_resize_kernel(tc, H, W, Ho, Wo, w_first=w_first, flat=flat,
                                 compute_dtype=compute_dtype)

    est = _vmem_estimate(tc, H, W, Ho, Wo, x_bytes, out_bytes, w_bytes)
    compiler_kwargs = dict(dimension_semantics=("parallel",))
    if est > 12 * _MiB:  # only raise the scoped VMEM limit when actually needed
        compiler_kwargs["vmem_limit_bytes"] = int(min(64 * _MiB, est + 16 * _MiB))

    out_flat = pl.pallas_call(
        kernel,
        out_shape=jax.ShapeDtypeStruct((N, Ho, Wo), out_dtype),
        grid_spec=pltpu.PrefetchScalarGridSpec(
            num_scalar_prefetch=0,
            grid=(N // tc,),
            in_specs=[
                pl.BlockSpec((tc, H, W), lambda n: (n, 0, 0)),
                pl.BlockSpec((Ho, H), lambda n: (0, 0)),
                pl.BlockSpec((W, Wo), lambda n: (0, 0)),
            ],
            out_specs=pl.BlockSpec((tc, Ho, Wo), lambda n: (n, 0, 0)),
        ),
        compiler_params=pltpu.CompilerParams(**compiler_kwargs),
    )(x_flat, wh, wwT)

    return out_flat.reshape(*lead, Ho, Wo)


# ---------------------------------------------------------------------------
# Resize module (forward-pass equivalent of kornia.geometry.transform.Resize)
# ---------------------------------------------------------------------------
class Resize:
    def __init__(
        self,
        size: Union[int, Tuple[int, int]],
        interpolation: str = "bilinear",
        align_corners: Optional[bool] = None,
        side: str = "short",
        antialias: bool = False,
    ) -> None:
        self.size = size
        self.interpolation = interpolation
        self.align_corners = align_corners
        self.side = side
        self.antialias = antialias

    def __call__(self, x: jnp.ndarray) -> jnp.ndarray:
        if x.ndim < 2:
            raise ValueError(f"Input tensor must have at least two dimensions. Got {x.ndim}")
        h, w = x.shape[-2:]
        size = self.size
        if isinstance(size, int):
            aspect_ratio = w / h
            size = _side_to_image_size(size, aspect_ratio, self.side)
        size = (int(size[0]), int(size[1]))
        if size == (int(h), int(w)):
            return x
        if self.interpolation != "bilinear":
            raise NotImplementedError("Only bilinear interpolation is implemented in the Pallas kernel.")
        factors = (h / size[0], w / size[1])
        if self.antialias and max(factors) > 1:
            # TODO(synk): antialias Gaussian pre-blur (gaussian_blur2d) not implemented in Pallas.
            pass
        align_corners = bool(self.align_corners) if self.align_corners is not None else False
        return _resize_bilinear_pallas(x, size, align_corners)


if __name__ == "__main__":
    key = jax.random.PRNGKey(0)
    x = jax.random.uniform(key, (2, 4, 16, 16), dtype=jnp.float32)

    def ref_resize(img, size, align_corners=False):
        wh = _bilinear_weight_matrix(size[0], img.shape[-2], align_corners)
        ww = _bilinear_weight_matrix(size[1], img.shape[-1], align_corners)
        return jnp.einsum("oh,bchw,pw->bcop", wh, img, ww)

    # 1) Downscale (H-resize-first order inside the kernel), bf16 MXU + f32 accum.
    out1 = jax.block_until_ready(Resize((8, 12), interpolation="bilinear")(x))
    assert out1.shape == (2, 4, 8, 12), out1.shape
    assert jnp.allclose(out1, ref_resize(x, (8, 12)), atol=3e-2, rtol=3e-2)

    # 2) Upscale (W-resize-first order), bf16 MXU + f32 accum.
    out2 = jax.block_until_ready(Resize((24, 20), interpolation="bilinear")(x))
    assert out2.shape == (2, 4, 24, 20), out2.shape
    assert jnp.allclose(out2, ref_resize(x, (24, 20)), atol=3e-2, rtol=3e-2)

    # 3) Multi-step grid (channels_per_step=2 -> 4 pipelined steps) with full f32
    #    compute: tight tolerance check against the reference.
    out3 = jax.block_until_ready(
        _resize_bilinear_pallas(x, (8, 12), False,
                                compute_dtype=jnp.float32, channels_per_step=2))
    assert out3.shape == (2, 4, 8, 12), out3.shape
    assert jnp.allclose(out3, ref_resize(x, (8, 12)), atol=1e-5, rtol=1e-5)

    print("KERNEL_OK")
</pallas_src>

<mosaic_0001>
module attributes {stable_mosaic.version = 11 : i64} {
  func.func @kernel(%arg0: i32, %arg1: memref<8x16x16xf32, #tpu.memory_space<vmem>>, %arg2: memref<8x16xbf16, #tpu.memory_space<vmem>>, %arg3: memref<16x12xbf16, #tpu.memory_space<vmem>>, %arg4: memref<8x8x12xf32, #tpu.memory_space<vmem>>) attributes {dimension_semantics = [#tpu.dimension_semantics<parallel>], iteration_bounds = array<i64: 1>, scalar_prefetch = 0 : i64, scratch_operands = 0 : i64, tpu.core_type = #tpu.core_type<tc>, window_params = [{transform_indices = @transform_0, window_bounds = array<i64: 8, 16, 16>}, {pipeline_mode = #tpu.pipeline_mode<synchronous>, transform_indices = @transform_1, window_bounds = array<i64: 8, 16>}, {pipeline_mode = #tpu.pipeline_mode<synchronous>, transform_indices = @transform_2, window_bounds = array<i64: 16, 12>}, {transform_indices = @transform_3, window_bounds = array<i64: 8, 8, 12>}]} {
    %c0 = arith.constant 0 : index
    %c0_0 = arith.constant 0 : index
    %c0_1 = arith.constant 0 : index
    %0 = vector.load %arg1[%c0, %c0_0, %c0_1] : memref<8x16x16xf32, #tpu.memory_space<vmem>>, vector<8x16x16xf32>
    %c0_2 = arith.constant 0 : index
    %c0_3 = arith.constant 0 : index
    %1 = vector.load %arg2[%c0_2, %c0_3] : memref<8x16xbf16, #tpu.memory_space<vmem>>, vector<8x16xbf16>
    %c0_4 = arith.constant 0 : index
    %c0_5 = arith.constant 0 : index
    %2 = vector.load %arg3[%c0_4, %c0_5] : memref<16x12xbf16, #tpu.memory_space<vmem>>, vector<16x12xbf16>
    %3 = vector.shape_cast %1 : vector<8x16xbf16> to vector<1x8x16xbf16>
    %4 = vector.shape_cast %3 : vector<1x8x16xbf16> to vector<1x8x16xbf16>
    %5 = vector.broadcast %4 : vector<1x8x16xbf16> to vector<8x8x16xbf16>
    %6 = arith.truncf %0 : vector<8x16x16xf32> to vector<8x16x16xbf16>
    %cst = arith.constant dense<0.000000e+00> : vector<8x8x16xf32>
    %7 = tpu.matmul %5, %6, %cst {dimension_numbers = #tpu.dot_dimension_numbers<[2], [1], [1], [2], [0, 0, 0, 1, 1, 2], [0], [0]>} : vector<8x8x16xbf16>, vector<8x16x16xbf16>, vector<8x8x16xf32> -> vector<8x8x16xf32>
    %8 = vector.shape_cast %7 : vector<8x8x16xf32> to vector<64x16xf32>
    %9 = arith.truncf %8 : vector<64x16xf32> to vector<64x16xbf16>
    %cst_6 = arith.constant dense<0.000000e+00> : vector<64x12xf32>
    %10 = tpu.matmul %9, %2, %cst_6 {dimension_numbers = #tpu.dot_dimension_numbers<[1], [0], [0], [1], [0, 0, 1, 1], [], []>} : vector<64x16xbf16>, vector<16x12xbf16>, vector<64x12xf32> -> vector<64x12xf32>
    %11 = vector.shape_cast %10 : vector<64x12xf32> to vector<8x8x12xf32>
    %c0_7 = arith.constant 0 : index
    %c0_8 = arith.constant 0 : index
    %c0_9 = arith.constant 0 : index
    %12 = vector.load %arg4[%c0_7, %c0_8, %c0_9] : memref<8x8x12xf32, #tpu.memory_space<vmem>>, vector<8x8x12xf32>
    tpu.vector_store %arg4[%c0_7, %c0_8, %c0_9], %11 {strides = array<i32>} : memref<8x8x12xf32, #tpu.memory_space<vmem>>, vector<8x8x12xf32>,
    return
  }
  func.func @transform_0(%arg0: i32) -> (i32, i32, i32) {
    %c0_i32 = arith.constant 0 : i32
    %c0_i32_0 = arith.constant 0 : i32
    %c0_i32_1 = arith.constant 0 : i32
    return %arg0, %c0_i32, %c0_i32_0 : i32, i32, i32
  }
  func.func @transform_1(%arg0: i32) -> (i32, i32) {
    %c0_i32 = arith.constant 0 : i32
    %c0_i32_0 = arith.constant 0 : i32
    %c0_i32_1 = arith.constant 0 : i32
    return %c0_i32, %c0_i32_0 : i32, i32
  }
  func.func @transform_2(%arg0: i32) -> (i32, i32) {
    %c0_i32 = arith.constant 0 : i32
    %c0_i32_0 = arith.constant 0 : i32
    %c0_i32_1 = arith.constant 0 : i32
    return %c0_i32, %c0_i32_0 : i32, i32
  }
  func.func @transform_3(%arg0: i32) -> (i32, i32, i32) {
    %c0_i32 = arith.constant 0 : i32
    %c0_i32_0 = arith.constant 0 : i32
    %c0_i32_1 = arith.constant 0 : i32
    return %arg0, %c0_i32, %c0_i32_0 : i32, i32, i32
  }
}

</mosaic_0001>

<llo_original>
// kernel: tpu_custom_call.1
$region0: #{tpu_custom_call.1}
  #allocation0 [shape = 'u32[]', space=smem, size = 0x4, offset = 0x4, fixed_abs, tag = 'smem constant byte address 0x4 - core index']
  #allocation1 [shape = 'u32[144,128]{1,0:T(1,128)}', space=vmem, size = 0x12000, scoped, tag = 'internal scratch']
  %s0 = inlined_call_operand.hbm [shape: f32[8,16,16], index: 0, kind: input, shape index: {}]
  %s1 = inlined_call_operand.hbm [shape: bf16[8,16], index: 1, kind: input, shape index: {}]
  %s2 = inlined_call_operand.hbm [shape: bf16[16,12], index: 2, kind: input, shape index: {}]
  %s3 = inlined_call_operand.hbm [shape: f32[8,8,12], index: 3, kind: output, shape index: {}]
  %s4 = sld [smem:[#allocation0]]
  $region34: #{tpu_custom_call.1} parent=0
    _
  %s6 = ssub.s32 1, %s4
  %s7 = scalar_select 0, %s6, %s4
  $region1: #{tpu_custom_call.1} parent=0
    #allocation2 [shape = 'u8[65536]{0}', space=vmem, size = 0x10000, scoped, tag = 'input window, operand 0, single buffered']
    #allocation3 [shape = 's32[1]{0}', space=sflag, size = 0x4, scoped, tag = 'scoped memory for tpu_custom_call.1']
    #allocation4 [shape = 's32[1]{0}', space=sflag, size = 0x4, scoped, tag = 'scoped memory for tpu_custom_call.1']
    #allocation5 [shape = 'u8[2048]{0}', space=vmem, size = 0x800, scoped, tag = 'input window, operand 1, single buffered']
    #allocation6 [shape = 's32[1]{0}', space=sflag, size = 0x4, scoped, tag = 'scoped memory for tpu_custom_call.1']
    #allocation7 [shape = 'u8[4096]{0}', space=vmem, size = 0x1000, scoped, tag = 'input window, operand 2, single buffered']
    #allocation8 [shape = 'u8[32768]{0}', space=vmem, size = 0x8000, scoped, tag = 'output window, operand 0, single buffered']
    %8 = vsyncpa [#allocation3], 0
    %9 = vsyncpa [#allocation6], 0
    %10 = vsyncpa [#allocation4], 0
    // Predicated region
    $region2: #{tpu_custom_call.1} parent=1 // pred_check
      _
    $region3: #{tpu_custom_call.1} parent=1 // pred_check_branch
      %12 = sbr.rel (0) target = $region5
    $region4: #{tpu_custom_call.1} parent=1 // pred_region
      %s14 = ssub.s32 2048, 2048
      %15 = vsyncadd [#allocation3], %s14
      %s16 = sshll.u32 [#allocation2], 4
      %s17 = int_to_ptr.vmem [resolvable:$true] %s16
      %22 = dma.hbm_to_vmem [thread:$0]  %s0, 2048, %s17, [#allocation3], 128, 128, 8
    $region5: #{tpu_custom_call.1} parent=1 // pred_fallthru
      _
    // Predicated region
    $region6: #{tpu_custom_call.1} parent=1 // pred_check
      _
    $region7: #{tpu_custom_call.1} parent=1 // pred_check_branch
      %24 = sbr.rel (0) target = $region9
    $region8: #{tpu_custom_call.1} parent=1 // pred_region
      %s26 = ssub.s32 64, 64
      %27 = vsyncadd [#allocation6], %s26
      %s29 = sshll.u32 [#allocation5], 4
      %s30 = int_to_ptr.vmem [resolvable:$true] %s29
      %32 = dma.hbm_to_vmem [thread:$0]  %s1, 64, %s30, [#allocation6]
    $region9: #{tpu_custom_call.1} parent=1 // pred_fallthru
      _
    // Predicated region
    $region10: #{tpu_custom_call.1} parent=1 // pred_check
      _
    $region11: #{tpu_custom_call.1} parent=1 // pred_check_branch
      %34 = sbr.rel (0) target = $region13
    $region12: #{tpu_custom_call.1} parent=1 // pred_region
      %s36 = ssub.s32 128, 128
      %37 = vsyncadd [#allocation6], %s36
      %s38 = sshll.u32 [#allocation7], 4
      %s39 = int_to_ptr.vmem [resolvable:$true] %s38
      %44 = dma.hbm_to_vmem [thread:$0]  %s2, 128, %s39, [#allocation6], 64, 64, 4
    $region13: #{tpu_custom_call.1} parent=1 // pred_fallthru
      _
    // Predicated region
    $region14: #{tpu_custom_call.1} parent=1 // pred_check
      _
    $region15: #{tpu_custom_call.1} parent=1 // pred_check_branch
      %46 = sbr.rel (0) target = $region17
    $region16: #{tpu_custom_call.1} parent=1 // pred_region
      %47 = dma.done [#allocation3], 2048
    $region17: #{tpu_custom_call.1} parent=1 // pred_fallthru
      _
    // Predicated region
    $region18: #{tpu_custom_call.1} parent=1 // pred_check
      _
    $region19: #{tpu_custom_call.1} parent=1 // pred_check_branch
      %49 = sbr.rel (0) target = $region21
    $region20: #{tpu_custom_call.1} parent=1 // pred_region
      %50 = dma.done [#allocation6], 64
    $region21: #{tpu_custom_call.1} parent=1 // pred_fallthru
      _
    // Predicated region
    $region22: #{tpu_custom_call.1} parent=1 // pred_check
      _
    $region23: #{tpu_custom_call.1} parent=1 // pred_check_branch
      %52 = sbr.rel (0) target = $region25
    $region24: #{tpu_custom_call.1} parent=1 // pred_region
      %53 = dma.done [#allocation6], 128
    $region25: #{tpu_custom_call.1} parent=1 // pred_fallthru
      _
    %v55 = vld [vmem:[#allocation2] sm:$0xff]
    %v56 = vld [vmem:[#allocation2 + $0x8] sm:$0xff]
    %v57 = vld [vmem:[#allocation2 + $0x10] sm:$0xff]
    %v58 = vld [vmem:[#allocation2 + $0x18] sm:$0xff]
    %v59 = vld [vmem:[#allocation2 + $0x20] sm:$0xff]
    %v60 = vld [vmem:[#allocation2 + $0x28] sm:$0xff]
    %v61 = vld [vmem:[#allocation2 + $0x30] sm:$0xff]
    %v62 = vld [vmem:[#allocation2 + $0x38] sm:$0xff]
    %v63 = vld [vmem:[#allocation2 + $0x40] sm:$0xff]
    %v64 = vld [vmem:[#allocation2 + $0x48] sm:$0xff]
    %v65 = vld [vmem:[#allocation2 + $0x50] sm:$0xff]
    %v66 = vld [vmem:[#allocation2 + $0x58] sm:$0xff]
    %v67 = vld [vmem:[#allocation2 + $0x60] sm:$0xff]
    %v68 = vld [vmem:[#allocation2 + $0x68] sm:$0xff]
    %v69 = vld [vmem:[#allocation2 + $0x70] sm:$0xff]
    %v70 = vld [vmem:[#allocation2 + $0x78] sm:$0xff]
    %v71 = vld [vmem:[#allocation5] sm:$0xf]
    %v72 = vld [vmem:[#allocation7] sm:$0xf]
    %v73 = vld [vmem:[#allocation7 + $0x4] sm:$0xf]
    %v74 = vpack.c.bf16 %v56, %v55
    %v75 = vpack.c.bf16 %v58, %v57
    %v76 = vpack.c.bf16 %v60, %v59
    %v77 = vpack.c.bf16 %v62, %v61
    %v78 = vpack.c.bf16 %v64, %v63
    %v79 = vpack.c.bf16 %v66, %v65
    %v80 = vpack.c.bf16 %v68, %v67
    %v81 = vpack.c.bf16 %v70, %v69
    %vm82 = vcmask 130048
    %v84 = vsel %vm82, %v71, 0
    %86 = vmatprep.subr.bf16.mxu0 0
    %87 = vmatpush1.bf16.msra.mxu0 %v74
    %88 = vmatprep.subr.bf16.mxu0 0
    %89 = vmatpush1.bf16.msra.mxu0 0
    %90 = vmatprep.subr.bf16.mxu0 0
    %91 = vmatpush1.bf16.msra.mxu0 0
    %92 = vmatprep.subr.bf16.mxu0 0
    %93 = vmatpush1.bf16.msra.mxu0 0
    %94 = vmatprep.subr.bf16.mxu0 0
    %95 = vmatpush1.bf16.msra.mxu0 0
    %96 = vmatprep.subr.bf16.mxu0 0
    %97 = vmatpush1.bf16.msra.mxu0 0
    %98 = vmatprep.subr.bf16.mxu0 0
    %99 = vmatpush1.bf16.msra.mxu0 0
    %100 = vmatprep.subr.bf16.mxu0 0
    %101 = vmatpush1.bf16.msra.mxu0 0
    %102 = vmatprep.subr.bf16.mxu0 0
    %103 = vmatpush1.bf16.msra.mxu0 0
    %104 = vmatprep.subr.bf16.mxu0 0
    %105 = vmatpush1.bf16.msra.mxu0 0
    %106 = vmatprep.subr.bf16.mxu0 0
    %107 = vmatpush1.bf16.msra.mxu0 0
    %108 = vmatprep.subr.bf16.mxu0 0
    %109 = vmatpush1.bf16.msra.mxu0 0
    %110 = vmatprep.subr.bf16.mxu0 0
    %111 = vmatpush1.bf16.msra.mxu0 0
    %112 = vmatprep.subr.bf16.mxu0 0
    %113 = vmatpush1.bf16.msra.mxu0 0
    %114 = vmatprep.subr.bf16.mxu0 0
    %115 = vmatpush1.bf16.msra.mxu0 0
    %116 = vmatprep.subr.bf16.mxu0 0
    %117 = vmatpush1.bf16.msra.mxu0 0
    %118 = vmatprep.mubr.bf16.mxu0 0
    %119 = vmatmul.mubr.bf16.gmra.mrb[0].mxu0 %v84
    %v120 = vpop.f32.mrb[0].mxu0
    %v121 = vadd.f32 0.0, %v120
    %v122 = vpop.f32.mrb[0].mxu0
    %v123 = vpop.f32.mrb[0].mxu0
    %v124 = vpop.f32.mrb[0].mxu0
    %125 = vdwg.mxu0
    %126 = vmatprep.subr.bf16.mxu0 0
    %127 = vmatpush1.bf16.msra.mxu0 %v75
    %128 = vmatprep.subr.bf16.mxu0 0
    %129 = vmatpush1.bf16.msra.mxu0 0
    %130 = vmatprep.subr.bf16.mxu0 0
    %131 = vmatpush1.bf16.msra.mxu0 0
    %132 = vmatprep.subr.bf16.mxu0 0
    %133 = vmatpush1.bf16.msra.mxu0 0
    %134 = vmatprep.subr.bf16.mxu0 0
    %135 = vmatpush1.bf16.msra.mxu0 0
    %136 = vmatprep.subr.bf16.mxu0 0
    %137 = vmatpush1.bf16.msra.mxu0 0
    %138 = vmatprep.subr.bf16.mxu0 0
    %139 = vmatpush1.bf16.msra.mxu0 0
    %140 = vmatprep.subr.bf16.mxu0 0
    %141 = vmatpush1.bf16.msra.mxu0 0
    %142 = vmatprep.subr.bf16.mxu0 0
    %143 = vmatpush1.bf16.msra.mxu0 0
    %144 = vmatprep.subr.bf16.mxu0 0
    %145 = vmatpush1.bf16.msra.mxu0 0
    %146 = vmatprep.subr.bf16.mxu0 0
    %147 = vmatpush1.bf16.msra.mxu0 0
    %148 = vmatprep.subr.bf16.mxu0 0
    %149 = vmatpush1.bf16.msra.mxu0 0
    %150 = vmatprep.subr.bf16.mxu0 0
    %151 = vmatpush1.bf16.msra.mxu0 0
    %152 = vmatprep.subr.bf16.mxu0 0
    %153 = vmatpush1.bf16.msra.mxu0 0
    %154 = vmatprep.subr.bf16.mxu0 0
    %155 = vmatpush1.bf16.msra.mxu0 0
    %156 = vmatprep.subr.bf16.mxu0 0
    %157 = vmatpush1.bf16.msra.mxu0 0
    %158 = vmatprep.mubr.bf16.mxu0 0
    %159 = vmatmul.mubr.bf16.gmra.mrb[0].mxu0 %v84
    %v160 = vpop.f32.mrb[0].mxu0
    %v161 = vadd.f32 0.0, %v160
    %v162 = vpop.f32.mrb[0].mxu0
    %v163 = vpop.f32.mrb[0].mxu0
    %v164 = vpop.f32.mrb[0].mxu0
    %165 = vdwg.mxu0
    %166 = vmatprep.subr.bf16.mxu0 0
    %167 = vmatpush1.bf16.msra.mxu0 %v76
    %168 = vmatprep.subr.bf16.mxu0 0
    %169 = vmatpush1.bf16.msra.mxu0 0
    %170 = vmatprep.subr.bf16.mxu0 0
    %171 = vmatpush1.bf16.msra.mxu0 0
    %172 = vmatprep.subr.bf16.mxu0 0
    %173 = vmatpush1.bf16.msra.mxu0 0
    %174 = vmatprep.subr.bf16.mxu0 0
    %175 = vmatpush1.bf16.msra.mxu0 0
    %176 = vmatprep.subr.bf16.mxu0 0
    %177 = vmatpush1.bf16.msra.mxu0 0
    %178 = vmatprep.subr.bf16.mxu0 0
    %179 = vmatpush1.bf16.msra.mxu0 0
    %180 = vmatprep.subr.bf16.mxu0 0
    %181 = vmatpush1.bf16.msra.mxu0 0
    %182 = vmatprep.subr.bf16.mxu0 0
    %183 = vmatpush1.bf16.msra.mxu0 0
    %184 = vmatprep.subr.bf16.mxu0 0
    %185 = vmatpush1.bf16.msra.mxu0 0
    %186 = vmatprep.subr.bf16.mxu0 0
    %187 = vmatpush1.bf16.msra.mxu0 0
    %188 = vmatprep.subr.bf16.mxu0 0
    %189 = vmatpush1.bf16.msra.mxu0 0
    %190 = vmatprep.subr.bf16.mxu0 0
    %191 = vmatpush1.bf16.msra.mxu0 0
    %192 = vmatprep.subr.bf16.mxu0 0
    %193 = vmatpush1.bf16.msra.mxu0 0
    %194 = vmatprep.subr.bf16.mxu0 0
    %195 = vmatpush1.bf16.msra.mxu0 0
    %196 = vmatprep.subr.bf16.mxu0 0
    %197 = vmatpush1.bf16.msra.mxu0 0
    %198 = vmatprep.mubr.bf16.mxu0 0
    %199 = vmatmul.mubr.bf16.gmra.mrb[0].mxu0 %v84
    %v200 = vpop.f32.mrb[0].mxu0
    %v201 = vadd.f32 0.0, %v200
    %v202 = vpop.f32.mrb[0].mxu0
    %v203 = vpop.f32.mrb[0].mxu0
    %v204 = vpop.f32.mrb[0].mxu0
    %205 = vdwg.mxu0
    %206 = vmatprep.subr.bf16.mxu0 0
    %207 = vmatpush1.bf16.msra.mxu0 %v77
    %208 = vmatprep.subr.bf16.mxu0 0
    %209 = vmatpush1.bf16.msra.mxu0 0
    %210 = vmatprep.subr.bf16.mxu0 0
    %211 = vmatpush1.bf16.msra.mxu0 0
    %212 = vmatprep.subr.bf16.mxu0 0
    %213 = vmatpush1.bf16.msra.mxu0 0
    %214 = vmatprep.subr.bf16.mxu0 0
    %215 = vmatpush1.bf16.msra.mxu0 0
    %216 = vmatprep.subr.bf16.mxu0 0
    %217 = vmatpush1.bf16.msra.mxu0 0
    %218 = vmatprep.subr.bf16.mxu0 0
    %219 = vmatpush1.bf16.msra.mxu0 0
    %220 = vmatprep.subr.bf16.mxu0 0
    %221 = vmatpush1.bf16.msra.mxu0 0
    %222 = vmatprep.subr.bf16.mxu0 0
    %223 = vmatpush1.bf16.msra.mxu0 0
    %224 = vmatprep.subr.bf16.mxu0 0
    %225 = vmatpush1.bf16.msra.mxu0 0
    %226 = vmatprep.subr.bf16.mxu0 0
    %227 = vmatpush1.bf16.msra.mxu0 0
    %228 = vmatprep.subr.bf16.mxu0 0
    %229 = vmatpush1.bf16.msra.mxu0 0
    %230 = vmatprep.subr.bf16.mxu0 0
    %231 = vmatpush1.bf16.msra.mxu0 0
    %232 = vmatprep.subr.bf16.mxu0 0
    %233 = vmatpush1.bf16.msra.mxu0 0
    %234 = vmatprep.subr.bf16.mxu0 0
    %235 = vmatpush1.bf16.msra.mxu0 0
    %236 = vmatprep.subr.bf16.mxu0 0
    %237 = vmatpush1.bf16.msra.mxu0 0
    %238 = vmatprep.mubr.bf16.mxu0 0
    %239 = vmatmul.mubr.bf16.gmra.mrb[0].mxu0 %v84
    %v240 = vpop.f32.mrb[0].mxu0
    %v241 = vadd.f32 0.0, %v240
    %v242 = vpop.f32.mrb[0].mxu0
    %v243 = vpop.f32.mrb[0].mxu0
    %v244 = vpop.f32.mrb[0].mxu0
    %245 = vdwg.mxu0
    %246 = vmatprep.subr.bf16.mxu0 0
    %247 = vmatpush1.bf16.msra.mxu0 %v78
    %248 = vmatprep.subr.bf16.mxu0 0
    %249 = vmatpush1.bf16.msra.mxu0 0
    %250 = vmatprep.subr.bf16.mxu0 0
    %251 = vmatpush1.bf16.msra.mxu0 0
    %252 = vmatprep.subr.bf16.mxu0 0
    %253 = vmatpush1.bf16.msra.mxu0 0
    %254 = vmatprep.subr.bf16.mxu0 0
    %255 = vmatpush1.bf16.msra.mxu0 0
    %256 = vmatprep.subr.bf16.mxu0 0
    %257 = vmatpush1.bf16.msra.mxu0 0
    %258 = vmatprep.subr.bf16.mxu0 0
    %259 = vmatpush1.bf16.msra.mxu0 0
    %260 = vmatprep.subr.bf16.mxu0 0
    %261 = vmatpush1.bf16.msra.mxu0 0
    %262 = vmatprep.subr.bf16.mxu0 0
    %263 = vmatpush1.bf16.msra.mxu0 0
    %264 = vmatprep.subr.bf16.mxu0 0
    %265 = vmatpush1.bf16.msra.mxu0 0
    %266 = vmatprep.subr.bf16.mxu0 0
    %267 = vmatpush1.bf16.msra.mxu0 0
    %268 = vmatprep.subr.bf16.mxu0 0
    %269 = vmatpush1.bf16.msra.mxu0 0
    %270 = vmatprep.subr.bf16.mxu0 0
    %271 = vmatpush1.bf16.msra.mxu0 0
    %272 = vmatprep.subr.bf16.mxu0 0
    %273 = vmatpush1.bf16.msra.mxu0 0
    %274 = vmatprep.subr.bf16.mxu0 0
    %275 = vmatpush1.bf16.msra.mxu0 0
    %276 = vmatprep.subr.bf16.mxu0 0
    %277 = vmatpush1.bf16.msra.mxu0 0
    %278 = vmatprep.mubr.bf16.mxu0 0
    %279 = vmatmul.mubr.bf16.gmra.mrb[0].mxu0 %v84
    %v280 = vpop.f32.mrb[0].mxu0
    %v281 = vadd.f32 0.0, %v280
    %v282 = vpop.f32.mrb[0].mxu0
    %v283 = vpop.f32.mrb[0].mxu0
    %v284 = vpop.f32.mrb[0].mxu0
    %285 = vdwg.mxu0
    %286 = vmatprep.subr.bf16.mxu0 0
    %287 = vmatpush1.bf16.msra.mxu0 %v79
    %288 = vmatprep.subr.bf16.mxu0 0
    %289 = vmatpush1.bf16.msra.mxu0 0
    %290 = vmatprep.subr.bf16.mxu0 0
    %291 = vmatpush1.bf16.msra.mxu0 0
    %292 = vmatprep.subr.bf16.mxu0 0
    %293 = vmatpush1.bf16.msra.mxu0 0
    %294 = vmatprep.subr.bf16.mxu0 0
    %295 = vmatpush1.bf16.msra.mxu0 0
    %296 = vmatprep.subr.bf16.mxu0 0
    %297 = vmatpush1.bf16.msra.mxu0 0
    %298 = vmatprep.subr.bf16.mxu0 0
    %299 = vmatpush1.bf16.msra.mxu0 0
    %300 = vmatprep.subr.bf16.mxu0 0
    %301 = vmatpush1.bf16.msra.mxu0 0
    %302 = vmatprep.subr.bf16.mxu0 0
    %303 = vmatpush1.bf16.msra.mxu0 0
    %304 = vmatprep.subr.bf16.mxu0 0
    %305 = vmatpush1.bf16.msra.mxu0 0
    %306 = vmatprep.subr.bf16.mxu0 0
    %307 = vmatpush1.bf16.msra.mxu0 0
    %308 = vmatprep.subr.bf16.mxu0 0
    %309 = vmatpush1.bf16.msra.mxu0 0
    %310 = vmatprep.subr.bf16.mxu0 0
    %311 = vmatpush1.bf16.msra.mxu0 0
    %312 = vmatprep.subr.bf16.mxu0 0
    %313 = vmatpush1.bf16.msra.mxu0 0
    %314 = vmatprep.subr.bf16.mxu0 0
    %315 = vmatpush1.bf16.msra.mxu0 0
    %316 = vmatprep.subr.bf16.mxu0 0
    %317 = vmatpush1.bf16.msra.mxu0 0
    %318 = vmatprep.mubr.bf16.mxu0 0
    %319 = vmatmul.mubr.bf16.gmra.mrb[0].mxu0 %v84
    %v320 = vpop.f32.mrb[0].mxu0
    %v321 = vadd.f32 0.0, %v320
    %v322 = vpop.f32.mrb[0].mxu0
    %v323 = vpop.f32.mrb[0].mxu0
    %v324 = vpop.f32.mrb[0].mxu0
    %325 = vdwg.mxu0
    %326 = vmatprep.subr.bf16.mxu0 0
    %327 = vmatpush1.bf16.msra.mxu0 %v80
    %328 = vmatprep.subr.bf16.mxu0 0
    %329 = vmatpush1.bf16.msra.mxu0 0
    %330 = vmatprep.subr.bf16.mxu0 0
    %331 = vmatpush1.bf16.msra.mxu0 0
    %332 = vmatprep.subr.bf16.mxu0 0
    %333 = vmatpush1.bf16.msra.mxu0 0
    %334 = vmatprep.subr.bf16.mxu0 0
    %335 = vmatpush1.bf16.msra.mxu0 0
    %336 = vmatprep.subr.bf16.mxu0 0
    %337 = vmatpush1.bf16.msra.mxu0 0
    %338 = vmatprep.subr.bf16.mxu0 0
    %339 = vmatpush1.bf16.msra.mxu0 0
    %340 = vmatprep.subr.bf16.mxu0 0
    %341 = vmatpush1.bf16.msra.mxu0 0
    %342 = vmatprep.subr.bf16.mxu0 0
    %343 = vmatpush1.bf16.msra.mxu0 0
    %344 = vmatprep.subr.bf16.mxu0 0
    %345 = vmatpush1.bf16.msra.mxu0 0
    %346 = vmatprep.subr.bf16.mxu0 0
    %347 = vmatpush1.bf16.msra.mxu0 0
    %348 = vmatprep.subr.bf16.mxu0 0
    %349 = vmatpush1.bf16.msra.mxu0 0
    %350 = vmatprep.subr.bf16.mxu0 0
    %351 = vmatpush1.bf16.msra.mxu0 0
    %352 = vmatprep.subr.bf16.mxu0 0
    %353 = vmatpush1.bf16.msra.mxu0 0
    %354 = vmatprep.subr.bf16.mxu0 0
    %355 = vmatpush1.bf16.msra.mxu0 0
    %356 = vmatprep.subr.bf16.mxu0 0
    %357 = vmatpush1.bf16.msra.mxu0 0
    %358 = vmatprep.mubr.bf16.mxu0 0
    %359 = vmatmul.mubr.bf16.gmra.mrb[0].mxu0 %v84
    %v360 = vpop.f32.mrb[0].mxu0
    %v361 = vadd.f32 0.0, %v360
    %v362 = vpop.f32.mrb[0].mxu0
    %v363 = vpop.f32.mrb[0].mxu0
    %v364 = vpop.f32.mrb[0].mxu0
    %365 = vdwg.mxu0
    %366 = vmatprep.subr.bf16.mxu0 0
    %367 = vmatpush1.bf16.msra.mxu0 %v81
    %368 = vmatprep.subr.bf16.mxu0 0
    %369 = vmatpush1.bf16.msra.mxu0 0
    %370 = vmatprep.subr.bf16.mxu0 0
    %371 = vmatpush1.bf16.msra.mxu0 0
    %372 = vmatprep.subr.bf16.mxu0 0
    %373 = vmatpush1.bf16.msra.mxu0 0
    %374 = vmatprep.subr.bf16.mxu0 0
    %375 = vmatpush1.bf16.msra.mxu0 0
    %376 = vmatprep.subr.bf16.mxu0 0
    %377 = vmatpush1.bf16.msra.mxu0 0
    %378 = vmatprep.subr.bf16.mxu0 0
    %379 = vmatpush1.bf16.msra.mxu0 0
    %380 = vmatprep.subr.bf16.mxu0 0
    %381 = vmatpush1.bf16.msra.mxu0 0
    %382 = vmatprep.subr.bf16.mxu0 0
    %383 = vmatpush1.bf16.msra.mxu0 0
    %384 = vmatprep.subr.bf16.mxu0 0
    %385 = vmatpush1.bf16.msra.mxu0 0
    %386 = vmatprep.subr.bf16.mxu0 0
    %387 = vmatpush1.bf16.msra.mxu0 0
    %388 = vmatprep.subr.bf16.mxu0 0
    %389 = vmatpush1.bf16.msra.mxu0 0
    %390 = vmatprep.subr.bf16.mxu0 0
    %391 = vmatpush1.bf16.msra.mxu0 0
    %392 = vmatprep.subr.bf16.mxu0 0
    %393 = vmatpush1.bf16.msra.mxu0 0
    %394 = vmatprep.subr.bf16.mxu0 0
    %395 = vmatpush1.bf16.msra.mxu0 0
    %396 = vmatprep.subr.bf16.mxu0 0
    %397 = vmatpush1.bf16.msra.mxu0 0
    %398 = vmatprep.mubr.bf16.mxu0 0
    %399 = vmatmul.mubr.bf16.gmra.mrb[0].mxu0 %v84
    %v400 = vpop.f32.mrb[0].mxu0
    %v401 = vadd.f32 0.0, %v400
    %v402 = vpop.f32.mrb[0].mxu0
    %v403 = vpop.f32.mrb[0].mxu0
    %v404 = vpop.f32.mrb[0].mxu0
    %405 = vdwg.mxu0
    %v406 = vpack.c.bf16 %v161, %v121
    %v407 = vpack.c.bf16 %v241, %v201
    %v408 = vpack.c.bf16 %v321, %v281
    %v409 = vpack.c.bf16 %v401, %v361
    %v412 = vunpack.c.l.b16 %v72
    %v413 = vunpack.c.l.b16 %v73
    %v414 = vpack.c.b16 %v413, %v412
    %v417 = vsel %vm82, %v406, 0
    %v420 = vsel %vm82, %v407, 0
    %v423 = vsel %vm82, %v408, 0
    %v426 = vsel %vm82, %v409, 0
    %428 = vmatprep.subr.bf16.mxu0 0
    %429 = vmatpush1.bf16.msra.mxu0 %v414
    %430 = vmatprep.subr.bf16.mxu0 0
    %431 = vmatpush1.bf16.msra.mxu0 0
    %432 = vmatprep.subr.bf16.mxu0 0
    %433 = vmatpush1.bf16.msra.mxu0 0
    %434 = vmatprep.subr.bf16.mxu0 0
    %435 = vmatpush1.bf16.msra.mxu0 0
    %436 = vmatprep.subr.bf16.mxu0 0
    %437 = vmatpush1.bf16.msra.mxu0 0
    %438 = vmatprep.subr.bf16.mxu0 0
    %439 = vmatpush1.bf16.msra.mxu0 0
    %440 = vmatprep.subr.bf16.mxu0 0
    %441 = vmatpush1.bf16.msra.mxu0 0
    %442 = vmatprep.subr.bf16.mxu0 0
    %443 = vmatpush1.bf16.msra.mxu0 0
    %444 = vmatprep.subr.bf16.mxu0 0
    %445 = vmatpush1.bf16.msra.mxu0 0
    %446 = vmatprep.subr.bf16.mxu0 0
    %447 = vmatpush1.bf16.msra.mxu0 0
    %448 = vmatprep.subr.bf16.mxu0 0
    %449 = vmatpush1.bf16.msra.mxu0 0
    %450 = vmatprep.subr.bf16.mxu0 0
    %451 = vmatpush1.bf16.msra.mxu0 0
    %452 = vmatprep.subr.bf16.mxu0 0
    %453 = vmatpush1.bf16.msra.mxu0 0
    %454 = vmatprep.subr.bf16.mxu0 0
    %455 = vmatpush1.bf16.msra.mxu0 0
    %456 = vmatprep.subr.bf16.mxu0 0
    %457 = vmatpush1.bf16.msra.mxu0 0
    %458 = vmatprep.subr.bf16.mxu0 0
    %459 = vmatpush1.bf16.msra.mxu0 0
    %460 = vmatprep.mubr.bf16.mxu0 0
    %461 = vmatmul.mubr.bf16.gmra.mrb[0].mxu0 %v417
    %v462 = vpop.f32.mrb[0].mxu0
    %v463 = vadd.f32 0.0, %v462
    %v464 = vpop.f32.mrb[0].mxu0
    %v465 = vpop.f32.mrb[0].mxu0
    %v466 = vadd.f32 0.0, %v465
    %v467 = vpop.f32.mrb[0].mxu0
    %468 = vmatprep.mubr.bf16.mxu0 0
    %469 = vmatmul.mubr.bf16.gmra.mrb[0].mxu0 %v420
    %v470 = vpop.f32.mrb[0].mxu0
    %v471 = vadd.f32 0.0, %v470
    %v472 = vpop.f32.mrb[0].mxu0
    %v473 = vpop.f32.mrb[0].mxu0
    %v474 = vadd.f32 0.0, %v473
    %v475 = vpop.f32.mrb[0].mxu0
    %476 = vmatprep.mubr.bf16.mxu0 0
    %477 = vmatmul.mubr.bf16.gmra.mrb[0].mxu0 %v423
    %v478 = vpop.f32.mrb[0].mxu0
    %v479 = vadd.f32 0.0, %v478
    %v480 = vpop.f32.mrb[0].mxu0
    %v481 = vpop.f32.mrb[0].mxu0
    %v482 = vadd.f32 0.0, %v481
    %v483 = vpop.f32.mrb[0].mxu0
    %484 = vmatprep.mubr.bf16.mxu0 0
    %485 = vmatmul.mubr.bf16.gmra.mrb[0].mxu0 %v426
    %v486 = vpop.f32.mrb[0].mxu0
    %v487 = vadd.f32 0.0, %v486
    %v488 = vpop.f32.mrb[0].mxu0
    %v489 = vpop.f32.mrb[0].mxu0
    %v490 = vadd.f32 0.0, %v489
    %v491 = vpop.f32.mrb[0].mxu0
    %492 = vdwg.mxu0
    %vm493 = vcmask 97280
    %494 = vst.msk [vmem:[#allocation8] sm:$0xff] %vm493, %v463
    %495 = vst.msk [vmem:[#allocation8 + $0x8] sm:$0xff] %vm493, %v466
    %496 = vst.msk [vmem:[#allocation8 + $0x10] sm:$0xff] %vm493, %v471
    %497 = vst.msk [vmem:[#allocation8 + $0x18] sm:$0xff] %vm493, %v474
    %498 = vst.msk [vmem:[#allocation8 + $0x20] sm:$0xff] %vm493, %v479
    %499 = vst.msk [vmem:[#allocation8 + $0x28] sm:$0xff] %vm493, %v482
    %500 = vst.msk [vmem:[#allocation8 + $0x30] sm:$0xff] %vm493, %v487
    %501 = vst.msk [vmem:[#allocation8 + $0x38] sm:$0xff] %vm493, %v490
    // Predicated region
    $region26: #{tpu_custom_call.1} parent=1 // pred_check
      _
    $region27: #{tpu_custom_call.1} parent=1 // pred_check_branch
      %503 = sbr.rel (0) target = $region29
    $region28: #{tpu_custom_call.1} parent=1 // pred_region
      %s505 = ssub.s32 1024, 1024
      %506 = vsyncadd [#allocation4], %s505
      %s507 = sshll.u32 [#allocation8], 4
      %s508 = int_to_ptr.vmem [resolvable:$true] %s507
      %513 = dma.vmem_to_hbm [thread:$0]  %s508, 1024, %s3, [#allocation4], 128, 128, 8
    $region29: #{tpu_custom_call.1} parent=1 // pred_fallthru
      _
    // Predicated region
    $region30: #{tpu_custom_call.1} parent=1 // pred_check
      _
    $region31: #{tpu_custom_call.1} parent=1 // pred_check_branch
      %515 = sbr.rel (0) target = $region33
    $region32: #{tpu_custom_call.1} parent=1 // pred_region
      %516 = dma.done [#allocation4], 1024
    $region33: #{tpu_custom_call.1} parent=1 // pred_fallthru
      _
    %517 = vsyncpa [#allocation3], 1
    %518 = vsyncpa [#allocation6], 1
    %519 = vsyncpa [#allocation4], 1

</llo_original>
